<compile_context>
chip_gen: v7x
topology: tpu7x:2x2x1
jax: 0.10.0
libtpu: 0.0.40
codegen_flags: <defaults>
</compile_context>

<pallas_src>
import jax
import jax.numpy as jnp
from jax.experimental import pallas as pl
from jax.experimental.pallas import tpu as pltpu

# Module hyper-parameters (mirrors __init__ defaults: num_modes=5,
# log_std_bounds=(-5, 2), state_dependent_log_std=True, squash_normal=True,
# log_std_tanh=True, output_act=None -> Identity).
NUM_MODES = 5
ACT_DIM = 6
OBS_DIM = 16
HIDDEN = 64                       # 2 hidden ReLU layers
LOG_STD_BOUNDS = (-5.0, 2.0)
MD = NUM_MODES * ACT_DIM          # 30, per-branch width
OUT_DIM = 2 * MD + NUM_MODES      # 65, MLP output width (state-dependent log_std)

LANE = 128
PAD_H = LANE                      # padded hidden width
PAD_OUT = LANE                    # fused output width
# Fused output lane layout:
#   [0, MD)              mu
#   [MD, 2*MD)           scale = exp(tanh-rescaled log_std)
#   [2*MD, OUT_DIM)      mixture logits
#   [OUT_DIM, OUT_DIM+MD) tanh(mu)  (SquashedNormal.loc)
#   [OUT_DIM+MD, 128)    zero padding


def _actor_kernel(obs_ref, w1_ref, b1_ref, w2_ref, b2_ref, w3_ref, b3_ref,
                  out_ref):
    """2-hidden-layer ReLU MLP + masked tanh/exp epilogue, one fused store."""
    wdt = w1_ref.dtype  # matmul operand dtype (f32 or bf16); accumulate in f32

    h = jnp.dot(obs_ref[...], w1_ref[...],
                preferred_element_type=jnp.float32) + b1_ref[...]
    h = jnp.maximum(h, 0.0).astype(wdt)
    h = jnp.dot(h, w2_ref[...],
                preferred_element_type=jnp.float32) + b2_ref[...]
    h = jnp.maximum(h, 0.0).astype(wdt)
    x = jnp.dot(h, w3_ref[...],
                preferred_element_type=jnp.float32) + b3_ref[...]

    # Single (1, 128) lane-id row; jnp.where broadcasts it over sublanes.
    col = jax.lax.broadcasted_iota(jnp.int32, (1, PAD_OUT), 1)
    is_log_std = jnp.logical_and(col >= MD, col < 2 * MD)
    is_tanh_mu = jnp.logical_and(col >= OUT_DIM, col < OUT_DIM + MD)

    # tanh/exp applied on all 128 lanes (EUP); exp stays bounded because tanh
    # comes first.  tanh(mu) is moved from lanes [0, MD) into the spare lanes
    # [OUT_DIM, OUT_DIM+MD) with one XLU rotate (the XLU is otherwise idle).
    lo, hi = LOG_STD_BOUNDS
    t = jnp.tanh(x)
    scale = jnp.exp(lo + 0.5 * (hi - lo) * (t + 1.0))
    t_mu = pltpu.roll(t, shift=OUT_DIM, axis=1)   # lane i <- t lane (i - OUT_DIM)

    out = jnp.where(is_log_std, scale, jnp.where(is_tanh_mu, t_mu, x))
    out_ref[...] = out.astype(out_ref.dtype)      # one unmasked 128-lane store


def _round_up(x, m):
    return (x + m - 1) // m * m


def _pad_to(a, shape):
    return jnp.pad(a, [(0, s - d) for d, s in zip(a.shape, shape)])


def pad_params(params, matmul_dtype=jnp.float32):
    """Zero-pad weights to lane-dense widths (done once, outside the hot path).

    Only the *output* side of w1 is padded — obs is streamed as (B, 16).
    Matmul operands may be bf16 (v6e/v7x); biases and the elementwise epilogue
    stay f32 (v5e's VPU/EUP have no bf16 support).
    """
    w1, b1, w2, b2, w3, b3 = params
    return (
        _pad_to(w1, (OBS_DIM, PAD_H)).astype(matmul_dtype),
        _pad_to(b1, (1, PAD_H)).astype(jnp.float32),
        _pad_to(w2, (PAD_H, PAD_H)).astype(matmul_dtype),
        _pad_to(b2, (1, PAD_H)).astype(jnp.float32),
        _pad_to(w3, (PAD_H, PAD_OUT)).astype(matmul_dtype),
        _pad_to(b3, (1, PAD_OUT)).astype(jnp.float32),
    )


@jax.jit
def gaussian_mixture_actor_forward(obs, padded_params):
    """Returns (mu, scale, logits, squashed_loc) parameterizing
    MixtureSameFamily(Categorical(logits),
                      Independent(SquashedNormal(mu, scale), 1))."""
    w1p, b1p, w2p, b2p, w3p, b3p = padded_params
    compute_dtype = w1p.dtype           # f32, or bf16 for the streamed bf16 path
    out_dtype = compute_dtype

    B = obs.shape[0]
    B_pad = _round_up(B, 8)             # sublane alignment only (cheap 64 B/row)
    obs_c = obs.astype(compute_dtype)
    if B_pad != B:
        obs_c = jnp.pad(obs_c, ((0, B_pad - B), (0, 0)))

    # >=2 grid steps whenever the batch allows it (feeds both v7x TCs via
    # "parallel"); cap at 1024 rows/tile.  Last block may be partial: OOB rows
    # are garbage reads / dropped writes and are sliced away below.
    B_TILE = min(_round_up(pl.cdiv(B_pad, 2), 8), 1024)
    grid = (pl.cdiv(B_pad, B_TILE),)

    const = lambda i: (0, 0)            # weights/biases stay VMEM-resident
    y = pl.pallas_call(
        _actor_kernel,
        out_shape=jax.ShapeDtypeStruct((B_pad, PAD_OUT), out_dtype),
        grid=grid,
        in_specs=[
            # obs last dim == full array dim (16) -> (8,128) rule satisfied,
            # no host-side lane padding needed.
            pl.BlockSpec((B_TILE, OBS_DIM), lambda i: (i, 0)),
            pl.BlockSpec(w1p.shape, const), pl.BlockSpec(b1p.shape, const),
            pl.BlockSpec(w2p.shape, const), pl.BlockSpec(b2p.shape, const),
            pl.BlockSpec(w3p.shape, const), pl.BlockSpec(b3p.shape, const),
        ],
        out_specs=pl.BlockSpec((B_TILE, PAD_OUT), lambda i: (i, 0)),
        compiler_params=pltpu.CompilerParams(
            dimension_semantics=("parallel",)),   # both TCs on v7x
    )(obs_c, w1p, b1p, w2p, b2p, w3p, b3p)

    # Cheap glue: un-pad, split, reshape (no extra tanh — it was fused).
    y = y[:B].astype(jnp.float32)
    mu = y[:, :MD].reshape(B, NUM_MODES, ACT_DIM)
    scale = y[:, MD:2 * MD].reshape(B, NUM_MODES, ACT_DIM)
    logits = y[:, 2 * MD:OUT_DIM]
    squashed_loc = y[:, OUT_DIM:OUT_DIM + MD].reshape(B, NUM_MODES, ACT_DIM)
    # TODO(synk): the torch.distributions MixtureSameFamily object itself has
    # no Pallas equivalent; downstream sampling/log_prob consume these tensors.
    return mu, scale, logits, squashed_loc


def _reference_forward(obs, params):
    """Pure-JAX f32 reference (HIGHEST matmul precision) for correctness."""
    w1, b1, w2, b2, w3, b3 = params
    hp = jax.lax.Precision.HIGHEST
    h = jnp.maximum(jnp.dot(obs, w1, precision=hp) + b1, 0.0)
    h = jnp.maximum(jnp.dot(h, w2, precision=hp) + b2, 0.0)
    x = jnp.dot(h, w3, precision=hp) + b3
    mu = x[:, :MD]
    log_std = x[:, MD:2 * MD]
    logits = x[:, 2 * MD:]
    lo, hi = LOG_STD_BOUNDS
    log_std = lo + 0.5 * (hi - lo) * (jnp.tanh(log_std) + 1.0)
    scale = jnp.exp(log_std)
    B = obs.shape[0]
    return (mu.reshape(B, NUM_MODES, ACT_DIM),
            scale.reshape(B, NUM_MODES, ACT_DIM),
            logits)


def _init_params(key):
    """Deterministic synthetic parameters matching the module's layer shapes."""
    ks = jax.random.split(key, 6)
    s = 0.1
    w1 = s * jax.random.normal(ks[0], (OBS_DIM, HIDDEN), jnp.float32)
    b1 = s * jax.random.normal(ks[1], (1, HIDDEN), jnp.float32)
    w2 = s * jax.random.normal(ks[2], (HIDDEN, HIDDEN), jnp.float32)
    b2 = s * jax.random.normal(ks[3], (1, HIDDEN), jnp.float32)
    w3 = s * jax.random.normal(ks[4], (HIDDEN, OUT_DIM), jnp.float32)
    b3 = s * jax.random.normal(ks[5], (1, OUT_DIM), jnp.float32)
    return (w1, b1, w2, b2, w3, b3)


def _check(outs, refs, atol, rtol):
    mu, scale, logits, squashed_loc = outs
    mu_ref, scale_ref, logits_ref = refs
    assert jnp.allclose(mu, mu_ref, atol=atol, rtol=rtol)
    assert jnp.allclose(scale, scale_ref, atol=atol, rtol=rtol)
    assert jnp.allclose(logits, logits_ref, atol=atol, rtol=rtol)
    assert jnp.allclose(squashed_loc, jnp.tanh(mu_ref), atol=atol, rtol=rtol)


if __name__ == "__main__":
    key = jax.random.PRNGKey(0)
    pkey, okey, okey2 = jax.random.split(key, 3)
    params = _init_params(pkey)

    # --- f32 weights, batch that maps to full tiles (batched: len(shape) > 1) ---
    B = 8
    obs = jax.random.normal(okey, (B, OBS_DIM), jnp.float32)
    pp_f32 = pad_params(params, jnp.float32)
    outs = jax.block_until_ready(gaussian_mixture_actor_forward(obs, pp_f32))
    mu, scale, logits, squashed_loc = outs
    assert mu.shape == (B, NUM_MODES, ACT_DIM)
    assert scale.shape == (B, NUM_MODES, ACT_DIM)
    assert logits.shape == (B, NUM_MODES)
    assert squashed_loc.shape == (B, NUM_MODES, ACT_DIM)
    # Tolerance allows for differing MXU f32 pass strategies (XLA vs Mosaic).
    _check(outs, _reference_forward(obs, params), atol=2e-2, rtol=2e-2)

    # --- f32 weights, batch exercising batch-pad + partial last block ---
    B2 = 20                      # B_pad=24, B_TILE=16 -> grid=(2,), partial tail
    obs2 = jax.random.normal(okey2, (B2, OBS_DIM), jnp.float32)
    outs2 = jax.block_until_ready(gaussian_mixture_actor_forward(obs2, pp_f32))
    assert outs2[0].shape == (B2, NUM_MODES, ACT_DIM)
    _check(outs2, _reference_forward(obs2, params), atol=2e-2, rtol=2e-2)

    # --- bf16-streamed path (v6e/v7x): bf16 weights/obs/output, f32 epilogue ---
    pp_bf16 = pad_params(params, jnp.bfloat16)
    outs_b = jax.block_until_ready(gaussian_mixture_actor_forward(obs, pp_bf16))
    _check(outs_b, _reference_forward(obs, params), atol=5e-2, rtol=1e-1)

    print("KERNEL_OK")
</pallas_src>

<mosaic_0001>
module attributes {stable_mosaic.version = 11 : i64} {
  func.func @_actor_kernel(%arg0: i32, %arg1: memref<8x16xf32, #tpu.memory_space<vmem>>, %arg2: memref<16x128xf32, #tpu.memory_space<vmem>>, %arg3: memref<1x128xf32, #tpu.memory_space<vmem>>, %arg4: memref<128x128xf32, #tpu.memory_space<vmem>>, %arg5: memref<1x128xf32, #tpu.memory_space<vmem>>, %arg6: memref<128x128xf32, #tpu.memory_space<vmem>>, %arg7: memref<1x128xf32, #tpu.memory_space<vmem>>, %arg8: memref<8x128xf32, #tpu.memory_space<vmem>>) attributes {dimension_semantics = [#tpu.dimension_semantics<parallel>], iteration_bounds = array<i64: 1>, scalar_prefetch = 0 : i64, scratch_operands = 0 : i64, tpu.core_type = #tpu.core_type<tc>, window_params = [{transform_indices = @transform_0, window_bounds = array<i64: 8, 16>}, {pipeline_mode = #tpu.pipeline_mode<synchronous>, transform_indices = @transform_1, window_bounds = array<i64: 16, 128>}, {pipeline_mode = #tpu.pipeline_mode<synchronous>, transform_indices = @transform_2, window_bounds = array<i64: 1, 128>}, {pipeline_mode = #tpu.pipeline_mode<synchronous>, transform_indices = @transform_3, window_bounds = array<i64: 128, 128>}, {pipeline_mode = #tpu.pipeline_mode<synchronous>, transform_indices = @transform_4, window_bounds = array<i64: 1, 128>}, {pipeline_mode = #tpu.pipeline_mode<synchronous>, transform_indices = @transform_5, window_bounds = array<i64: 128, 128>}, {pipeline_mode = #tpu.pipeline_mode<synchronous>, transform_indices = @transform_6, window_bounds = array<i64: 1, 128>}, {transform_indices = @transform_7, window_bounds = array<i64: 8, 128>}]} {
    %c0 = arith.constant 0 : index
    %c0_0 = arith.constant 0 : index
    %0 = vector.load %arg1[%c0, %c0_0] : memref<8x16xf32, #tpu.memory_space<vmem>>, vector<8x16xf32>
    %c0_1 = arith.constant 0 : index
    %c0_2 = arith.constant 0 : index
    %1 = vector.load %arg2[%c0_1, %c0_2] : memref<16x128xf32, #tpu.memory_space<vmem>>, vector<16x128xf32>
    %cst = arith.constant dense<0.000000e+00> : vector<8x128xf32>
    %2 = tpu.matmul %0, %1, %cst {dimension_numbers = #tpu.dot_dimension_numbers<[1], [0], [0], [1], [0, 0, 1, 1], [], []>} : vector<8x16xf32>, vector<16x128xf32>, vector<8x128xf32> -> vector<8x128xf32>
    %c0_3 = arith.constant 0 : index
    %c0_4 = arith.constant 0 : index
    %3 = vector.load %arg3[%c0_3, %c0_4] : memref<1x128xf32, #tpu.memory_space<vmem>>, vector<1x128xf32>
    %4 = vector.broadcast %3 : vector<1x128xf32> to vector<8x128xf32>
    %5 = arith.addf %2, %4 : vector<8x128xf32>
    %cst_5 = arith.constant 0.000000e+00 : f32
    %6 = vector.broadcast %cst_5 : f32 to vector<8x128xf32>
    %7 = arith.maximumf %5, %6 : vector<8x128xf32>
    %c0_6 = arith.constant 0 : index
    %c0_7 = arith.constant 0 : index
    %8 = vector.load %arg4[%c0_6, %c0_7] : memref<128x128xf32, #tpu.memory_space<vmem>>, vector<128x128xf32>
    %cst_8 = arith.constant dense<0.000000e+00> : vector<8x128xf32>
    %9 = tpu.matmul %7, %8, %cst_8 {dimension_numbers = #tpu.dot_dimension_numbers<[1], [0], [0], [1], [0, 0, 1, 1], [], []>} : vector<8x128xf32>, vector<128x128xf32>, vector<8x128xf32> -> vector<8x128xf32>
    %c0_9 = arith.constant 0 : index
    %c0_10 = arith.constant 0 : index
    %10 = vector.load %arg5[%c0_9, %c0_10] : memref<1x128xf32, #tpu.memory_space<vmem>>, vector<1x128xf32>
    %11 = vector.broadcast %10 : vector<1x128xf32> to vector<8x128xf32>
    %12 = arith.addf %9, %11 : vector<8x128xf32>
    %cst_11 = arith.constant 0.000000e+00 : f32
    %13 = vector.broadcast %cst_11 : f32 to vector<8x128xf32>
    %14 = arith.maximumf %12, %13 : vector<8x128xf32>
    %c0_12 = arith.constant 0 : index
    %c0_13 = arith.constant 0 : index
    %15 = vector.load %arg6[%c0_12, %c0_13] : memref<128x128xf32, #tpu.memory_space<vmem>>, vector<128x128xf32>
    %cst_14 = arith.constant dense<0.000000e+00> : vector<8x128xf32>
    %16 = tpu.matmul %14, %15, %cst_14 {dimension_numbers = #tpu.dot_dimension_numbers<[1], [0], [0], [1], [0, 0, 1, 1], [], []>} : vector<8x128xf32>, vector<128x128xf32>, vector<8x128xf32> -> vector<8x128xf32>
    %c0_15 = arith.constant 0 : index
    %c0_16 = arith.constant 0 : index
    %17 = vector.load %arg7[%c0_15, %c0_16] : memref<1x128xf32, #tpu.memory_space<vmem>>, vector<1x128xf32>
    %18 = vector.broadcast %17 : vector<1x128xf32> to vector<8x128xf32>
    %19 = arith.addf %16, %18 : vector<8x128xf32>
    %20 = tpu.iota {dimensions = array<i32: 1>} : vector<1x128xi32>
    %c30_i32 = arith.constant 30 : i32
    %21 = vector.broadcast %c30_i32 : i32 to vector<1x128xi32>
    %22 = arith.cmpi sge, %20, %21 : vector<1x128xi32>
    %c60_i32 = arith.constant 60 : i32
    %23 = vector.broadcast %c60_i32 : i32 to vector<1x128xi32>
    %24 = arith.cmpi slt, %20, %23 : vector<1x128xi32>
    %25 = arith.andi %22, %24 : vector<1x128xi1>
    %c65_i32 = arith.constant 65 : i32
    %26 = vector.broadcast %c65_i32 : i32 to vector<1x128xi32>
    %27 = arith.cmpi sge, %20, %26 : vector<1x128xi32>
    %c95_i32 = arith.constant 95 : i32
    %28 = vector.broadcast %c95_i32 : i32 to vector<1x128xi32>
    %29 = arith.cmpi slt, %20, %28 : vector<1x128xi32>
    %30 = arith.andi %27, %29 : vector<1x128xi1>
    %31 = math.tanh %19 : vector<8x128xf32>
    %cst_17 = arith.constant 1.000000e+00 : f32
    %32 = vector.broadcast %cst_17 : f32 to vector<8x128xf32>
    %33 = arith.addf %31, %32 : vector<8x128xf32>
    %cst_18 = arith.constant 3.500000e+00 : f32
    %34 = vector.broadcast %cst_18 : f32 to vector<8x128xf32>
    %35 = arith.mulf %34, %33 : vector<8x128xf32>
    %cst_19 = arith.constant -5.000000e+00 : f32
    %36 = vector.broadcast %cst_19 : f32 to vector<8x128xf32>
    %37 = arith.addf %36, %35 : vector<8x128xf32>
    %38 = math.exp %37 : vector<8x128xf32>
    %c65_i32_20 = arith.constant 65 : i32
    %39 = tpu.dynamic_rotate %31 by %c65_i32_20 dim 1 : vector<8x128xf32>, i32 -> vector<8x128xf32>
    %40 = vector.shape_cast %30 : vector<1x128xi1> to vector<1x128xi1>
    %41 = vector.broadcast %40 : vector<1x128xi1> to vector<8x128xi1>
    %42 = arith.select %41, %39, %19 : vector<8x128xi1>, vector<8x128xf32>
    %43 = vector.shape_cast %25 : vector<1x128xi1> to vector<1x128xi1>
    %44 = vector.broadcast %43 : vector<1x128xi1> to vector<8x128xi1>
    %45 = arith.select %44, %38, %42 : vector<8x128xi1>, vector<8x128xf32>
    %c0_21 = arith.constant 0 : index
    %c0_22 = arith.constant 0 : index
    %46 = vector.load %arg8[%c0_21, %c0_22] : memref<8x128xf32, #tpu.memory_space<vmem>>, vector<8x128xf32>
    tpu.vector_store %arg8[%c0_21, %c0_22], %45 {strides = array<i32>} : memref<8x128xf32, #tpu.memory_space<vmem>>, vector<8x128xf32>,
    return
  }
  func.func @transform_0(%arg0: i32) -> (i32, i32) {
    %c0_i32 = arith.constant 0 : i32
    %c0_i32_0 = arith.constant 0 : i32
    return %arg0, %c0_i32 : i32, i32
  }
  func.func @transform_1(%arg0: i32) -> (i32, i32) {
    %c0_i32 = arith.constant 0 : i32
    %c0_i32_0 = arith.constant 0 : i32
    %c0_i32_1 = arith.constant 0 : i32
    return %c0_i32, %c0_i32_0 : i32, i32
  }
  func.func @transform_2(%arg0: i32) -> (i32, i32) {
    %c0_i32 = arith.constant 0 : i32
    %c0_i32_0 = arith.constant 0 : i32
    %c0_i32_1 = arith.constant 0 : i32
    return %c0_i32, %c0_i32_0 : i32, i32
  }
  func.func @transform_3(%arg0: i32) -> (i32, i32) {
    %c0_i32 = arith.constant 0 : i32
    %c0_i32_0 = arith.constant 0 : i32
    %c0_i32_1 = arith.constant 0 : i32
    return %c0_i32, %c0_i32_0 : i32, i32
  }
  func.func @transform_4(%arg0: i32) -> (i32, i32) {
    %c0_i32 = arith.constant 0 : i32
    %c0_i32_0 = arith.constant 0 : i32
    %c0_i32_1 = arith.constant 0 : i32
    return %c0_i32, %c0_i32_0 : i32, i32
  }
  func.func @transform_5(%arg0: i32) -> (i32, i32) {
    %c0_i32 = arith.constant 0 : i32
    %c0_i32_0 = arith.constant 0 : i32
    %c0_i32_1 = arith.constant 0 : i32
    return %c0_i32, %c0_i32_0 : i32, i32
  }
  func.func @transform_6(%arg0: i32) -> (i32, i32) {
    %c0_i32 = arith.constant 0 : i32
    %c0_i32_0 = arith.constant 0 : i32
    %c0_i32_1 = arith.constant 0 : i32
    return %c0_i32, %c0_i32_0 : i32, i32
  }
  func.func @transform_7(%arg0: i32) -> (i32, i32) {
    %c0_i32 = arith.constant 0 : i32
    %c0_i32_0 = arith.constant 0 : i32
    return %arg0, %c0_i32 : i32, i32
  }
}

</mosaic_0001>

<llo_original>
// kernel: gaussian_mixture_actor_forward.1
$region0: #{gaussian_mixture_actor_forward.1}
  #allocation0 [shape = 'u32[]', space=smem, size = 0x4, offset = 0x4, fixed_abs, tag = 'smem constant byte address 0x4 - core index']
  #allocation1 [shape = 'u32[144,128]{1,0:T(1,128)}', space=vmem, size = 0x12000, scoped, tag = 'internal scratch']
  %s0 = inlined_call_operand.hbm [shape: f32[8,16], index: 0, kind: input, shape index: {}]
  %s1 = inlined_call_operand.hbm [shape: f32[16,128], index: 1, kind: input, shape index: {}]
  %s2 = inlined_call_operand.vmem [shape: f32[1,128], index: 2, kind: input, shape index: {}]
  %s3 = inlined_call_operand.hbm [shape: f32[128,128], index: 3, kind: input, shape index: {}]
  %s4 = inlined_call_operand.vmem [shape: f32[1,128], index: 4, kind: input, shape index: {}]
  %s5 = inlined_call_operand.hbm [shape: f32[128,128], index: 5, kind: input, shape index: {}]
  %s6 = inlined_call_operand.vmem [shape: f32[1,128], index: 6, kind: input, shape index: {}]
  %s7 = inlined_call_operand.vmem [shape: f32[8,128], index: 7, kind: output, shape index: {}]
  %s8 = sld [smem:[#allocation0]]
  $region54: #{gaussian_mixture_actor_forward.1} parent=0
    _
  %s10 = ssub.s32 1, %s8
  %s11 = scalar_select 0, %s10, %s8
  $region1: #{gaussian_mixture_actor_forward.1} parent=0
    #allocation2 [shape = 'u8[4096]{0}', space=vmem, size = 0x1000, scoped, tag = 'input window, operand 0, single buffered']
    #allocation3 [shape = 's32[1]{0}', space=sflag, size = 0x4, scoped, tag = 'scoped memory for gaussian_mixture_actor_forward.1']
    #allocation4 [shape = 'u8[8192]{0}', space=vmem, size = 0x2000, scoped, tag = 'input window, operand 1, single buffered']
    #allocation5 [shape = 's32[1]{0}', space=sflag, size = 0x4, scoped, tag = 'scoped memory for gaussian_mixture_actor_forward.1']
    #allocation6 [shape = 'u8[65536]{0}', space=vmem, size = 0x10000, scoped, tag = 'input window, operand 3, single buffered']
    #allocation7 [shape = 'u8[65536]{0}', space=vmem, size = 0x10000, scoped, tag = 'input window, operand 5, single buffered']
    #allocation8 [shape = 's32[1]{0}', space=sflag, size = 0x4, scoped, tag = 'scoped memory for gaussian_mixture_actor_forward.1']
    %12 = vsyncpa [#allocation3], 0
    %13 = vsyncpa [#allocation5], 0
    %14 = vsyncpa [#allocation8], 0
    // Predicated region
    $region2: #{gaussian_mixture_actor_forward.1} parent=1 // pred_check
      _
    $region3: #{gaussian_mixture_actor_forward.1} parent=1 // pred_check_branch
      %16 = sbr.rel (0) target = $region5
    $region4: #{gaussian_mixture_actor_forward.1} parent=1 // pred_region
      %s18 = ssub.s32 128, 128
      %19 = vsyncadd [#allocation3], %s18
      %s21 = sshll.u32 [#allocation2], 4
      %s22 = int_to_ptr.vmem [resolvable:$true] %s21
      %24 = dma.hbm_to_vmem [thread:$0]  %s0, 128, %s22, [#allocation3]
    $region5: #{gaussian_mixture_actor_forward.1} parent=1 // pred_fallthru
      _
    // Predicated region
    $region6: #{gaussian_mixture_actor_forward.1} parent=1 // pred_check
      _
    $region7: #{gaussian_mixture_actor_forward.1} parent=1 // pred_check_branch
      %26 = sbr.rel (0) target = $region9
    $region8: #{gaussian_mixture_actor_forward.1} parent=1 // pred_region
      %s28 = ssub.s32 256, 256
      %29 = vsyncadd [#allocation5], %s28
      %s30 = sshll.u32 [#allocation4], 4
      %s31 = int_to_ptr.vmem [resolvable:$true] %s30
      %36 = dma.hbm_to_vmem [thread:$0]  %s1, 256, %s31, [#allocation5], 128, 128, 8
    $region9: #{gaussian_mixture_actor_forward.1} parent=1 // pred_fallthru
      _
    // Predicated region
    $region10: #{gaussian_mixture_actor_forward.1} parent=1 // pred_check
      _
    $region11: #{gaussian_mixture_actor_forward.1} parent=1 // pred_check_branch
      %38 = sbr.rel (0) target = $region13
    $region12: #{gaussian_mixture_actor_forward.1} parent=1 // pred_region
      _
    $region13: #{gaussian_mixture_actor_forward.1} parent=1 // pred_fallthru
      _
    // Predicated region
    $region14: #{gaussian_mixture_actor_forward.1} parent=1 // pred_check
      _
    $region15: #{gaussian_mixture_actor_forward.1} parent=1 // pred_check_branch
      %40 = sbr.rel (0) target = $region17
    $region16: #{gaussian_mixture_actor_forward.1} parent=1 // pred_region
      %s42 = ssub.s32 2048, 2048
      %43 = vsyncadd [#allocation5], %s42
      %s44 = sshll.u32 [#allocation6], 4
      %s45 = int_to_ptr.vmem [resolvable:$true] %s44
      %50 = dma.hbm_to_vmem [thread:$0]  %s3, 2048, %s45, [#allocation5], 128, 128, 8
    $region17: #{gaussian_mixture_actor_forward.1} parent=1 // pred_fallthru
      _
    // Predicated region
    $region18: #{gaussian_mixture_actor_forward.1} parent=1 // pred_check
      _
    $region19: #{gaussian_mixture_actor_forward.1} parent=1 // pred_check_branch
      %52 = sbr.rel (0) target = $region21
    $region20: #{gaussian_mixture_actor_forward.1} parent=1 // pred_region
      _
    $region21: #{gaussian_mixture_actor_forward.1} parent=1 // pred_fallthru
      _
    // Predicated region
    $region22: #{gaussian_mixture_actor_forward.1} parent=1 // pred_check
      _
    $region23: #{gaussian_mixture_actor_forward.1} parent=1 // pred_check_branch
      %54 = sbr.rel (0) target = $region25
    $region24: #{gaussian_mixture_actor_forward.1} parent=1 // pred_region
      %s56 = ssub.s32 2048, 2048
      %57 = vsyncadd [#allocation8], %s56
      %s58 = sshll.u32 [#allocation7], 4
      %s59 = int_to_ptr.vmem [resolvable:$true] %s58
      %64 = dma.hbm_to_vmem [thread:$0]  %s5, 2048, %s59, [#allocation8], 128, 128, 8
    $region25: #{gaussian_mixture_actor_forward.1} parent=1 // pred_fallthru
      _
    // Predicated region
    $region26: #{gaussian_mixture_actor_forward.1} parent=1 // pred_check
      _
    $region27: #{gaussian_mixture_actor_forward.1} parent=1 // pred_check_branch
      %66 = sbr.rel (0) target = $region29
    $region28: #{gaussian_mixture_actor_forward.1} parent=1 // pred_region
      _
    $region29: #{gaussian_mixture_actor_forward.1} parent=1 // pred_fallthru
      _
    // Predicated region
    $region30: #{gaussian_mixture_actor_forward.1} parent=1 // pred_check
      _
    $region31: #{gaussian_mixture_actor_forward.1} parent=1 // pred_check_branch
      %68 = sbr.rel (0) target = $region33
    $region32: #{gaussian_mixture_actor_forward.1} parent=1 // pred_region
      %69 = dma.done [#allocation3], 128
    $region33: #{gaussian_mixture_actor_forward.1} parent=1 // pred_fallthru
      _
    // Predicated region
    $region34: #{gaussian_mixture_actor_forward.1} parent=1 // pred_check
      _
    $region35: #{gaussian_mixture_actor_forward.1} parent=1 // pred_check_branch
      %71 = sbr.rel (0) target = $region37
    $region36: #{gaussian_mixture_actor_forward.1} parent=1 // pred_region
      %72 = dma.done [#allocation5], 256
    $region37: #{gaussian_mixture_actor_forward.1} parent=1 // pred_fallthru
      _
    // Predicated region
    $region38: #{gaussian_mixture_actor_forward.1} parent=1 // pred_check
      _
    $region39: #{gaussian_mixture_actor_forward.1} parent=1 // pred_check_branch
      %74 = sbr.rel (0) target = $region41
    $region40: #{gaussian_mixture_actor_forward.1} parent=1 // pred_region
      %75 = dma.done [#allocation5], 2048
    $region41: #{gaussian_mixture_actor_forward.1} parent=1 // pred_fallthru
      _
    // Predicated region
    $region42: #{gaussian_mixture_actor_forward.1} parent=1 // pred_check
      _
    $region43: #{gaussian_mixture_actor_forward.1} parent=1 // pred_check_branch
      %77 = sbr.rel (0) target = $region45
    $region44: #{gaussian_mixture_actor_forward.1} parent=1 // pred_region
      %78 = dma.done [#allocation8], 2048
    $region45: #{gaussian_mixture_actor_forward.1} parent=1 // pred_fallthru
      _
    %v79 = vld [vmem:[#allocation2] sm:$0xff]
    %v80 = vld [vmem:[#allocation4] sm:$0xff]
    %v81 = vld [vmem:[#allocation4 + $0x8] sm:$0xff]
    %v82 = vld [vmem:[%s2] sm:$0x1]
    %v84 = vlaneseq
    %v85 = vshrl.u32 %v84, 7
    %v86 = vsub.s32 0, %v85
    %v87 = vrot.slane %v82, %v86
    %vm89 = vcmask 130048
    %v91 = vsel %vm89, %v79, 0
    %93 = vmatprep.subr.mxu0 0.0
    %94 = vmatpush1.msra.mxu0 %v80
    %95 = vmatprep.subr.mxu0 0.0
    %96 = vmatpush1.msra.mxu0 %v81
    %97 = vmatprep.subr.mxu0 0.0
    %98 = vmatpush1.msra.mxu0 0.0
    %99 = vmatprep.subr.mxu0 0.0
    %100 = vmatpush1.msra.mxu0 0.0
    %101 = vmatprep.subr.mxu0 0.0
    %102 = vmatpush1.msra.mxu0 0.0
    %103 = vmatprep.subr.mxu0 0.0
    %104 = vmatpush1.msra.mxu0 0.0
    %105 = vmatprep.subr.mxu0 0.0
    %106 = vmatpush1.msra.mxu0 0.0
    %107 = vmatprep.subr.mxu0 0.0
    %108 = vmatpush1.msra.mxu0 0.0
    %109 = vmatprep.subr.mxu0 0.0
    %110 = vmatpush1.msra.mxu0 0.0
    %111 = vmatprep.subr.mxu0 0.0
    %112 = vmatpush1.msra.mxu0 0.0
    %113 = vmatprep.subr.mxu0 0.0
    %114 = vmatpush1.msra.mxu0 0.0
    %115 = vmatprep.subr.mxu0 0.0
    %116 = vmatpush1.msra.mxu0 0.0
    %117 = vmatprep.subr.mxu0 0.0
    %118 = vmatpush1.msra.mxu0 0.0
    %119 = vmatprep.subr.mxu0 0.0
    %120 = vmatpush1.msra.mxu0 0.0
    %121 = vmatprep.subr.mxu0 0.0
    %122 = vmatpush1.msra.mxu0 0.0
    %123 = vmatprep.subr.mxu0 0.0
    %124 = vmatpush1.msra.mxu0 0.0
    %125 = vmatprep.subr.mxu0 0.0
    %126 = vmatpush1.msra.mxu0 0.0
    %127 = vmatprep.subr.mxu0 0.0
    %128 = vmatpush1.msra.mxu0 0.0
    %129 = vmatprep.subr.mxu0 0.0
    %130 = vmatpush1.msra.mxu0 0.0
    %131 = vmatprep.subr.mxu0 0.0
    %132 = vmatpush1.msra.mxu0 0.0
    %133 = vmatprep.subr.mxu0 0.0
    %134 = vmatpush1.msra.mxu0 0.0
    %135 = vmatprep.subr.mxu0 0.0
    %136 = vmatpush1.msra.mxu0 0.0
    %137 = vmatprep.subr.mxu0 0.0
    %138 = vmatpush1.msra.mxu0 0.0
    %139 = vmatprep.subr.mxu0 0.0
    %140 = vmatpush1.msra.mxu0 0.0
    %141 = vmatprep.subr.mxu0 0.0
    %142 = vmatpush1.msra.mxu0 0.0
    %143 = vmatprep.subr.mxu0 0.0
    %144 = vmatpush1.msra.mxu0 0.0
    %145 = vmatprep.subr.mxu0 0.0
    %146 = vmatpush1.msra.mxu0 0.0
    %147 = vmatprep.subr.mxu0 0.0
    %148 = vmatpush1.msra.mxu0 0.0
    %149 = vmatprep.subr.mxu0 0.0
    %150 = vmatpush1.msra.mxu0 0.0
    %151 = vmatprep.subr.mxu0 0.0
    %152 = vmatpush1.msra.mxu0 0.0
    %153 = vmatprep.subr.mxu0 0.0
    %154 = vmatpush1.msra.mxu0 0.0
    %155 = vmatprep.subr.mxu0 0.0
    %156 = vmatpush1.msra.mxu0 0.0
    %157 = vmatprep.mubr.f32.mxu0 0.0
    %158 = vmatmul.mubr.f32.gmra.mrb[0].mxu0 %v91
    %v159 = vpop.f32.mrb[0].mxu0
    %v160 = vadd.f32 %v87, %v159
    %v161 = vpop.f32.mrb[0].mxu0
    %162 = vdwg.mxu0
    %v163 = vmax.f32 %v160, 0.0
    %v164 = vld [vmem:[#allocation6] sm:$0xff]
    %v165 = vld [vmem:[#allocation6 + $0x8] sm:$0xff]
    %v166 = vld [vmem:[#allocation6 + $0x10] sm:$0xff]
    %v167 = vld [vmem:[#allocation6 + $0x18] sm:$0xff]
    %v168 = vld [vmem:[#allocation6 + $0x20] sm:$0xff]
    %v169 = vld [vmem:[#allocation6 + $0x28] sm:$0xff]
    %v170 = vld [vmem:[#allocation6 + $0x30] sm:$0xff]
    %v171 = vld [vmem:[#allocation6 + $0x38] sm:$0xff]
    %v172 = vld [vmem:[#allocation6 + $0x40] sm:$0xff]
    %v173 = vld [vmem:[#allocation6 + $0x48] sm:$0xff]
    %v174 = vld [vmem:[#allocation6 + $0x50] sm:$0xff]
    %v175 = vld [vmem:[#allocation6 + $0x58] sm:$0xff]
    %v176 = vld [vmem:[#allocation6 + $0x60] sm:$0xff]
    %v177 = vld [vmem:[#allocation6 + $0x68] sm:$0xff]
    %v178 = vld [vmem:[#allocation6 + $0x70] sm:$0xff]
    %v179 = vld [vmem:[#allocation6 + $0x78] sm:$0xff]
    %v180 = vld [vmem:[%s4] sm:$0x1]
    %v182 = vlaneseq
    %v183 = vshrl.u32 %v182, 7
    %v184 = vsub.s32 0, %v183
    %v185 = vrot.slane %v180, %v184
    %187 = vmatprep.subr.mxu0 0.0
    %188 = vmatpush1.msra.mxu0 %v164
    %189 = vmatprep.subr.mxu0 0.0
    %190 = vmatpush1.msra.mxu0 %v165
    %191 = vmatprep.subr.mxu0 0.0
    %192 = vmatpush1.msra.mxu0 %v166
    %193 = vmatprep.subr.mxu0 0.0
    %194 = vmatpush1.msra.mxu0 %v167
    %195 = vmatprep.subr.mxu0 0.0
    %196 = vmatpush1.msra.mxu0 %v168
    %197 = vmatprep.subr.mxu0 0.0
    %198 = vmatpush1.msra.mxu0 %v169
    %199 = vmatprep.subr.mxu0 0.0
    %200 = vmatpush1.msra.mxu0 %v170
    %201 = vmatprep.subr.mxu0 0.0
    %202 = vmatpush1.msra.mxu0 %v171
    %203 = vmatprep.subr.mxu0 0.0
    %204 = vmatpush1.msra.mxu0 %v172
    %205 = vmatprep.subr.mxu0 0.0
    %206 = vmatpush1.msra.mxu0 %v173
    %207 = vmatprep.subr.mxu0 0.0
    %208 = vmatpush1.msra.mxu0 %v174
    %209 = vmatprep.subr.mxu0 0.0
    %210 = vmatpush1.msra.mxu0 %v175
    %211 = vmatprep.subr.mxu0 0.0
    %212 = vmatpush1.msra.mxu0 %v176
    %213 = vmatprep.subr.mxu0 0.0
    %214 = vmatpush1.msra.mxu0 %v177
    %215 = vmatprep.subr.mxu0 0.0
    %216 = vmatpush1.msra.mxu0 %v178
    %217 = vmatprep.subr.mxu0 0.0
    %218 = vmatpush1.msra.mxu0 %v179
    %219 = vmatprep.subr.mxu0 0.0
    %220 = vmatpush1.msra.mxu0 0.0
    %221 = vmatprep.subr.mxu0 0.0
    %222 = vmatpush1.msra.mxu0 0.0
    %223 = vmatprep.subr.mxu0 0.0
    %224 = vmatpush1.msra.mxu0 0.0
    %225 = vmatprep.subr.mxu0 0.0
    %226 = vmatpush1.msra.mxu0 0.0
    %227 = vmatprep.subr.mxu0 0.0
    %228 = vmatpush1.msra.mxu0 0.0
    %229 = vmatprep.subr.mxu0 0.0
    %230 = vmatpush1.msra.mxu0 0.0
    %231 = vmatprep.subr.mxu0 0.0
    %232 = vmatpush1.msra.mxu0 0.0
    %233 = vmatprep.subr.mxu0 0.0
    %234 = vmatpush1.msra.mxu0 0.0
    %235 = vmatprep.subr.mxu0 0.0
    %236 = vmatpush1.msra.mxu0 0.0
    %237 = vmatprep.subr.mxu0 0.0
    %238 = vmatpush1.msra.mxu0 0.0
    %239 = vmatprep.subr.mxu0 0.0
    %240 = vmatpush1.msra.mxu0 0.0
    %241 = vmatprep.subr.mxu0 0.0
    %242 = vmatpush1.msra.mxu0 0.0
    %243 = vmatprep.subr.mxu0 0.0
    %244 = vmatpush1.msra.mxu0 0.0
    %245 = vmatprep.subr.mxu0 0.0
    %246 = vmatpush1.msra.mxu0 0.0
    %247 = vmatprep.subr.mxu0 0.0
    %248 = vmatpush1.msra.mxu0 0.0
    %249 = vmatprep.subr.mxu0 0.0
    %250 = vmatpush1.msra.mxu0 0.0
    %251 = vmatprep.mubr.f32.mxu0 0.0
    %252 = vmatmul.mubr.f32.gmra.mrb[0].mxu0 %v163
    %v253 = vpop.f32.mrb[0].mxu0
    %v254 = vadd.f32 %v185, %v253
    %v255 = vpop.f32.mrb[0].mxu0
    %256 = vdwg.mxu0
    %v257 = vmax.f32 %v254, 0.0
    %v258 = vld [vmem:[#allocation7] sm:$0xff]
    %v259 = vld [vmem:[#allocation7 + $0x8] sm:$0xff]
    %v260 = vld [vmem:[#allocation7 + $0x10] sm:$0xff]
    %v261 = vld [vmem:[#allocation7 + $0x18] sm:$0xff]
    %v262 = vld [vmem:[#allocation7 + $0x20] sm:$0xff]
    %v263 = vld [vmem:[#allocation7 + $0x28] sm:$0xff]
    %v264 = vld [vmem:[#allocation7 + $0x30] sm:$0xff]
    %v265 = vld [vmem:[#allocation7 + $0x38] sm:$0xff]
    %v266 = vld [vmem:[#allocation7 + $0x40] sm:$0xff]
    %v267 = vld [vmem:[#allocation7 + $0x48] sm:$0xff]
    %v268 = vld [vmem:[#allocation7 + $0x50] sm:$0xff]
    %v269 = vld [vmem:[#allocation7 + $0x58] sm:$0xff]
    %v270 = vld [vmem:[#allocation7 + $0x60] sm:$0xff]
    %v271 = vld [vmem:[#allocation7 + $0x68] sm:$0xff]
    %v272 = vld [vmem:[#allocation7 + $0x70] sm:$0xff]
    %v273 = vld [vmem:[#allocation7 + $0x78] sm:$0xff]
    %v274 = vld [vmem:[%s6] sm:$0x1]
    %v276 = vlaneseq
    %v277 = vshrl.u32 %v276, 7
    %v278 = vsub.s32 0, %v277
    %v279 = vrot.slane %v274, %v278
    %281 = vmatprep.subr.mxu0 0.0
    %282 = vmatpush1.msra.mxu0 %v258
    %283 = vmatprep.subr.mxu0 0.0
    %284 = vmatpush1.msra.mxu0 %v259
    %285 = vmatprep.subr.mxu0 0.0
    %286 = vmatpush1.msra.mxu0 %v260
    %287 = vmatprep.subr.mxu0 0.0
    %288 = vmatpush1.msra.mxu0 %v261
    %289 = vmatprep.subr.mxu0 0.0
    %290 = vmatpush1.msra.mxu0 %v262
    %291 = vmatprep.subr.mxu0 0.0
    %292 = vmatpush1.msra.mxu0 %v263
    %293 = vmatprep.subr.mxu0 0.0
    %294 = vmatpush1.msra.mxu0 %v264
    %295 = vmatprep.subr.mxu0 0.0
    %296 = vmatpush1.msra.mxu0 %v265
    %297 = vmatprep.subr.mxu0 0.0
    %298 = vmatpush1.msra.mxu0 %v266
    %299 = vmatprep.subr.mxu0 0.0
    %300 = vmatpush1.msra.mxu0 %v267
    %301 = vmatprep.subr.mxu0 0.0
    %302 = vmatpush1.msra.mxu0 %v268
    %303 = vmatprep.subr.mxu0 0.0
    %304 = vmatpush1.msra.mxu0 %v269
    %305 = vmatprep.subr.mxu0 0.0
    %306 = vmatpush1.msra.mxu0 %v270
    %307 = vmatprep.subr.mxu0 0.0
    %308 = vmatpush1.msra.mxu0 %v271
    %309 = vmatprep.subr.mxu0 0.0
    %310 = vmatpush1.msra.mxu0 %v272
    %311 = vmatprep.subr.mxu0 0.0
    %312 = vmatpush1.msra.mxu0 %v273
    %313 = vmatprep.subr.mxu0 0.0
    %314 = vmatpush1.msra.mxu0 0.0
    %315 = vmatprep.subr.mxu0 0.0
    %316 = vmatpush1.msra.mxu0 0.0
    %317 = vmatprep.subr.mxu0 0.0
    %318 = vmatpush1.msra.mxu0 0.0
    %319 = vmatprep.subr.mxu0 0.0
    %320 = vmatpush1.msra.mxu0 0.0
    %321 = vmatprep.subr.mxu0 0.0
    %322 = vmatpush1.msra.mxu0 0.0
    %323 = vmatprep.subr.mxu0 0.0
    %324 = vmatpush1.msra.mxu0 0.0
    %325 = vmatprep.subr.mxu0 0.0
    %326 = vmatpush1.msra.mxu0 0.0
    %327 = vmatprep.subr.mxu0 0.0
    %328 = vmatpush1.msra.mxu0 0.0
    %329 = vmatprep.subr.mxu0 0.0
    %330 = vmatpush1.msra.mxu0 0.0
    %331 = vmatprep.subr.mxu0 0.0
    %332 = vmatpush1.msra.mxu0 0.0
    %333 = vmatprep.subr.mxu0 0.0
    %334 = vmatpush1.msra.mxu0 0.0
    %335 = vmatprep.subr.mxu0 0.0
    %336 = vmatpush1.msra.mxu0 0.0
    %337 = vmatprep.subr.mxu0 0.0
    %338 = vmatpush1.msra.mxu0 0.0
    %339 = vmatprep.subr.mxu0 0.0
    %340 = vmatpush1.msra.mxu0 0.0
    %341 = vmatprep.subr.mxu0 0.0
    %342 = vmatpush1.msra.mxu0 0.0
    %343 = vmatprep.subr.mxu0 0.0
    %344 = vmatpush1.msra.mxu0 0.0
    %345 = vmatprep.mubr.f32.mxu0 0.0
    %346 = vmatmul.mubr.f32.gmra.mrb[0].mxu0 %v257
    %v347 = vpop.f32.mrb[0].mxu0
    %v348 = vadd.f32 %v279, %v347
    %v349 = vpop.f32.mrb[0].mxu0
    %350 = vdwg.mxu0
    %v351 = vlaneseq
    %v352 = vand.u32 %v351, 127
    %vm353 = vcmp.ge.s32.totalorder %v352, 30
    %vm354 = vcmp.lt.s32.totalorder %v352, 60
    %vm355 = vmand %vm353, %vm354
    %vm356 = vcmp.ge.s32.totalorder %v352, 65
    %vm357 = vcmp.lt.s32.totalorder %v352, 95
    %vm358 = vmand %vm356, %vm357
    %v359 = vtanh.pop %v348
    %v360 = vadd.f32 %v359, 1.0
    %v361 = vmul.f32 %v360, 3.5
    %v362 = vadd.f32 %v361, -5.0
    %v363 = vmul.f32 %v362, 1.442695
    %v364 = vpow.pop %v363
    %365 = vrot.lane.b32.xlu0 %v359, 65
    %v366 = vpop.permute.xlu0 %365
    %v367 = vsel %vm358, 1, 0
    %vm368 = vcmp.eq.s32.totalorder %v367, 1
    %v369 = vsel %vm368, %v366, %v348
    %v370 = vsel %vm355, 1, 0
    %vm371 = vcmp.eq.s32.totalorder %v370, 1
    %v372 = vsel %vm371, %v364, %v369
    %373 = vst [vmem:[%s7] sm:$0xff] %v372
    // Predicated region
    $region46: #{gaussian_mixture_actor_forward.1} parent=1 // pred_check
      _
    $region47: #{gaussian_mixture_actor_forward.1} parent=1 // pred_check_branch
      %375 = sbr.rel (0) target = $region49
    $region48: #{gaussian_mixture_actor_forward.1} parent=1 // pred_region
      _
    $region49: #{gaussian_mixture_actor_forward.1} parent=1 // pred_fallthru
      _
    // Predicated region
    $region50: #{gaussian_mixture_actor_forward.1} parent=1 // pred_check
      _
    $region51: #{gaussian_mixture_actor_forward.1} parent=1 // pred_check_branch
      %377 = sbr.rel (0) target = $region53
    $region52: #{gaussian_mixture_actor_forward.1} parent=1 // pred_region
      _
    $region53: #{gaussian_mixture_actor_forward.1} parent=1 // pred_fallthru
      _
    %378 = vsyncpa [#allocation3], 1
    %379 = vsyncpa [#allocation5], 1
    %380 = vsyncpa [#allocation8], 1

</llo_original>
